<compile_context>
chip_gen: v7x
topology: tpu7x:2x2x1
jax: 0.10.0
libtpu: 0.0.40
codegen_flags: <defaults>
</compile_context>

<pallas_src>
import functools
import math

import jax
import jax.numpy as jnp
from jax import lax
from jax.experimental import pallas as pl
from jax.experimental.pallas import tpu as pltpu

BN_EPS = 1e-5
_VMEM_LIMIT = 48 * 1024 * 1024


def _pick_tile(total, cap, mult=1):
    """Largest divisor of `total` <= cap, preferring multiples of `mult`."""
    total = int(total)
    cap = int(max(1, min(cap, total)))
    fallback = 0
    for t in range(cap, 0, -1):
        if total % t:
            continue
        if t == total or t % mult == 0:
            return t
        if fallback == 0:
            fallback = t
    return fallback if fallback else 1


# --------------------- fused SIM gate (upsample + 1x1 convs + gating) ---------------------

def _sim_gate_kernel(x1_ref, x2_ref, wc_ref, wg_ref, sbl_ref, sbg_ref, o_ref):
    th1, w1, c1 = x1_ref.shape[1], x1_ref.shape[2], x1_ref.shape[3]
    c2 = o_ref.shape[4] // 2
    m1 = th1 * w1

    x1 = x1_ref[0].reshape(m1, c1).astype(jnp.bfloat16)
    # ConvTranspose2d(k=2,s=2) composed with local_cv's 1x1 conv + folded BN:
    # single matmul whose output lanes are ordered (dy, dx, c).
    loc = jnp.dot(x1, wc_ref[...], preferred_element_type=jnp.float32)
    loc = loc * sbl_ref[0:1, :] + sbl_ref[1:2, :]

    for dy in range(2):
        # lanes (dx, c) of the up-sampled rows with parity dy -- this matches the
        # (N, H1, 2, W1, 2*C2) view of x2 / the output, so no relayout is needed.
        loc_dy = loc[:, dy * 2 * c2:(dy + 1) * 2 * c2]
        x2d = x2_ref[0, :, dy].reshape(m1, 2 * c2).astype(jnp.bfloat16)
        # both gate 1x1 convs in one (block-diagonal over dx) matmul, lanes (k, dx, c)
        g = jnp.dot(x2d, wg_ref[...], preferred_element_type=jnp.float32)
        g = g * sbg_ref[0:1, :] + sbg_ref[1:2, :]
        gate = jax.nn.sigmoid(g[:, :2 * c2])
        add = g[:, 2 * c2:]
        o_ref[0, :, dy] = (gate * loc_dy + add).reshape(th1, w1, 2 * c2).astype(o_ref.dtype)


def sim_gate(x1, x2, p, out_dtype=jnp.bfloat16):
    N, H1, W1, C1 = x1.shape
    _, H2, W2, C2 = x2.shape
    assert H2 == 2 * H1 and W2 == 2 * W1
    x2r = x2.reshape(N, H1, 2, W1, 2 * C2)          # free metadata reshape

    # row tile from a rough VMEM budget (blocks double-buffered + f32 intermediates)
    bytes_per_row = W1 * (4 * C1 + 32 * C2) + 32 * W1 * C2
    cap = max(1, (12 * 2 ** 20) // max(bytes_per_row, 1))
    TH1 = _pick_tile(H1, cap)
    grid = (N, H1 // TH1)

    def const(shape):
        return pl.BlockSpec(shape, lambda n, r: (0,) * len(shape))

    out = pl.pallas_call(
        _sim_gate_kernel,
        grid=grid,
        out_shape=jax.ShapeDtypeStruct((N, H1, 2, W1, 2 * C2), out_dtype),
        in_specs=[
            pl.BlockSpec((1, TH1, W1, C1), lambda n, r: (n, r, 0, 0)),
            pl.BlockSpec((1, TH1, 2, W1, 2 * C2), lambda n, r: (n, r, 0, 0, 0)),
            const((C1, 4 * C2)),
            const((2 * C2, 4 * C2)),
            const((2, 4 * C2)),
            const((2, 4 * C2)),
        ],
        out_specs=pl.BlockSpec((1, TH1, 2, W1, 2 * C2), lambda n, r: (n, r, 0, 0, 0)),
        compiler_params=pltpu.CompilerParams(
            dimension_semantics=("parallel", "parallel"),
            vmem_limit_bytes=_VMEM_LIMIT),
    )(x1, x2r, p["wc"], p["wg"], p["sb_loc"], p["sb_g"])
    return out.reshape(N, H2, W2, C2)


# ----------------------- 3x3 conv + BN + ReLU (+ fused final 1x1) -----------------------

def _conv3x3_kernel(x_hbm, w_ref, sb_ref, *rest, rows_per_image, rows_total,
                    has_proj, dense_out):
    if has_proj:
        pw_ref, pb_ref, o_ref, xbuf, sem = rest
    else:
        pw_ref = pb_ref = None
        o_ref, xbuf, sem = rest

    n = pl.program_id(0)
    r = pl.program_id(1)
    num_r = pl.num_programs(1)
    th = xbuf.shape[1] - 4
    w = xbuf.shape[2]
    cin = xbuf.shape[3]
    cout = w_ref.shape[2] // 3
    m = th * w

    def make_copy(nn, rr, slot):
        first = nn * rows_per_image + rr * th - 1            # wanted top-halo row
        start = jnp.clip(first, 0, rows_total - (th + 2))    # keep the DMA in bounds
        # destination offset keeps the centre rows at buffer rows [2, th + 2) so all
        # compute-side slices are static; halo rows that don't exist are masked below.
        return pltpu.make_async_copy(
            x_hbm.at[pl.ds(start, th + 2)],
            xbuf.at[slot, pl.ds(start - first + 1, th + 2)],
            sem.at[slot])

    @pl.when(r == 0)                       # prime this image's pipeline
    def _():
        make_copy(n, 0, 0).start()

    slot = r % 2

    @pl.when(r + 1 < num_r)                # prefetch the next halo window
    def _():
        make_copy(n, r + 1, 1 - slot).start()

    make_copy(n, r, slot).wait()           # same descriptor as the matching .start()

    row = lax.broadcasted_iota(jnp.int32, (m, 1), 0) // w
    col = lax.broadcasted_iota(jnp.int32, (m, 1), 0) % w
    zero = jnp.zeros((), xbuf.dtype)

    # 3 dy-slab matmuls with the 3 horizontal taps grouped into the output lanes; the
    # horizontal shifts are applied to the matmul outputs with pltpu.roll + edge masks.
    accs = [None, None, None]
    for dy in range(3):
        slab = xbuf.at[slot][dy + 1:dy + 1 + th].reshape(m, cin)
        if dy == 0:      # image-top pad row (only the first tile's first output row)
            slab = jnp.where((r == 0) & (row == 0), zero, slab)
        if dy == 2:      # image-bottom pad row (only the last tile's last output row)
            slab = jnp.where((r == num_r - 1) & (row == th - 1), zero, slab)
        part = jnp.dot(slab.astype(jnp.bfloat16), w_ref[dy],
                       preferred_element_type=jnp.float32)        # (m, 3*cout)
        for dx in range(3):
            piece = part[:, dx * cout:(dx + 1) * cout]
            accs[dx] = piece if accs[dx] is None else accs[dx] + piece

    y = accs[1]
    y = y + jnp.where(col == 0, 0.0, pltpu.roll(accs[0], shift=1, axis=0))
    y = y + jnp.where(col == w - 1, 0.0, pltpu.roll(accs[2], shift=m - 1, axis=0))
    y = jnp.maximum(y * sb_ref[0:1, :] + sb_ref[1:2, :], 0.0)     # folded BN + ReLU

    if has_proj:                                                  # fused final 1x1 conv
        cfin = pw_ref.shape[-1]
        y = jnp.dot(y.astype(jnp.bfloat16), pw_ref[...],
                    preferred_element_type=jnp.float32) + pb_ref[...]
        if dense_out:                                             # lane-dense logits store
            o_ref[0] = y.reshape(th, w * cfin).astype(o_ref.dtype)
        else:
            o_ref[0] = y.reshape(th, w, cfin).astype(o_ref.dtype)
    else:
        o_ref[0] = y.reshape(th, w, cout).astype(o_ref.dtype)


def _conv3x3_fallback(x, w3, sb, proj_w, proj_b, out_dtype):
    # TODO(synk): degenerate tiny-image path (N*H < 3) runs as plain JAX, not Pallas.
    N, H, W, Cin = x.shape
    cout = w3.shape[-1] // 3
    wk = w3.reshape(3, Cin, 3, cout).transpose(0, 2, 1, 3).astype(jnp.float32)
    y = lax.conv_general_dilated(x.astype(jnp.float32), wk, (1, 1), "SAME",
                                 dimension_numbers=("NHWC", "HWIO", "NHWC"))
    y = jnp.maximum(y * sb[0] + sb[1], 0.0)
    if proj_w is not None:
        y = y @ proj_w.astype(jnp.float32) + proj_b
    return y.astype(out_dtype)


def conv3x3_bn_relu(x, w3, sb, proj_w=None, proj_b=None, out_dtype=jnp.bfloat16):
    """3x3 conv (pad=1, no bias) + folded BN + ReLU; optional fused trailing 1x1 proj."""
    N, H, W, Cin = x.shape
    Cout = w3.shape[-1] // 3
    has_proj = proj_w is not None
    Cfin = proj_w.shape[-1] if has_proj else Cout

    # row tile from a VMEM budget (double-buffered halo input, f32 tap parts, out block)
    bytes_per_row = W * (4 * Cin + 28 * Cout + 4 * Cfin)
    cap = max(1, (16 * 2 ** 20) // max(bytes_per_row, 1))
    TH = _pick_tile(H, cap, mult=8)
    while TH + 2 > N * H and TH > 1:           # the halo window must fit inside the array
        TH = _pick_tile(H, TH - 1, mult=8)
    if TH + 2 > N * H:
        return _conv3x3_fallback(x, w3, sb, proj_w, proj_b, out_dtype)

    dense_out = has_proj and (TH % 8 == 0 or TH == H)
    xr = x.reshape(N * H, W, Cin)              # flat rows for the manual halo DMA (free)
    grid = (N, H // TH)

    def const(shape):
        return pl.BlockSpec(shape, lambda n, r: (0,) * len(shape))

    in_specs = [pl.BlockSpec(memory_space=pl.ANY),   # halo windows are DMA'd manually
                const((3, Cin, 3 * Cout)),
                const((2, Cout))]
    args = [xr, w3, sb]
    if has_proj:
        in_specs += [const((Cout, Cfin)), const((1, Cfin))]
        args += [proj_w, proj_b.reshape(1, Cfin)]
    if has_proj and dense_out:
        out_shape = jax.ShapeDtypeStruct((N, H, W * Cfin), out_dtype)
        out_spec = pl.BlockSpec((1, TH, W * Cfin), lambda n, r: (n, r, 0))
    else:
        out_shape = jax.ShapeDtypeStruct((N, H, W, Cfin), out_dtype)
        out_spec = pl.BlockSpec((1, TH, W, Cfin), lambda n, r: (n, r, 0, 0))

    out = pl.pallas_call(
        functools.partial(_conv3x3_kernel, rows_per_image=H, rows_total=N * H,
                          has_proj=has_proj, dense_out=dense_out),
        grid=grid,
        out_shape=out_shape,
        in_specs=in_specs,
        out_specs=out_spec,
        scratch_shapes=[
            pltpu.VMEM((2, TH + 4, W, Cin), x.dtype),
            pltpu.SemaphoreType.DMA((2,)),
        ],
        compiler_params=pltpu.CompilerParams(
            dimension_semantics=("parallel", "arbitrary"),
            vmem_limit_bytes=_VMEM_LIMIT),
    )(*args)
    if has_proj and dense_out:
        out = out.reshape(N, H, W, Cfin)
    return out


# ----------------------------------- bilinear resize -----------------------------------

def _resize_kernel(x_ref, rh_ref, rwc_ref, o_ref):
    t = jnp.dot(rh_ref[...], x_ref[0], preferred_element_type=jnp.float32)
    o_ref[0] = jnp.dot(t, rwc_ref[...],
                       preferred_element_type=jnp.float32).astype(o_ref.dtype)


def _resize_matrix(out_size, in_size):
    # PyTorch F.interpolate(mode="bilinear", align_corners=False) source-index rule.
    i = jnp.arange(out_size, dtype=jnp.float32)
    scale = in_size / out_size
    src = jnp.maximum((i + 0.5) * scale - 0.5, 0.0)
    i0 = jnp.minimum(jnp.floor(src).astype(jnp.int32), in_size - 1)
    i1 = jnp.minimum(i0 + 1, in_size - 1)
    w1 = src - i0.astype(jnp.float32)
    w0 = 1.0 - w1
    return (w0[:, None] * jax.nn.one_hot(i0, in_size, dtype=jnp.float32)
            + w1[:, None] * jax.nn.one_hot(i1, in_size, dtype=jnp.float32))


def bilinear_resize_nhwc(x, h, w):
    """Separable bilinear resize with channels folded into the matmul lanes."""
    N, H, W, C = x.shape
    rh = _resize_matrix(h, H)                       # (h, H)
    rw = _resize_matrix(w, W)                       # (w, W)
    rwc = (rw.T[:, None, :, None] *
           jnp.eye(C, dtype=jnp.float32)[None, :, None, :]).reshape(W * C, w * C)
    xf = x.reshape(N, H, W * C).astype(jnp.float32)

    cap = max(1, (8 * 2 ** 20) // max(w * C * 4, 1))
    THo = _pick_tile(h, cap, mult=8)
    if THo % 8 != 0 and THo != h:
        THo = h
    grid = (N, h // THo)

    out = pl.pallas_call(
        _resize_kernel,
        grid=grid,
        out_shape=jax.ShapeDtypeStruct((N, h, w * C), jnp.float32),
        in_specs=[
            pl.BlockSpec((1, H, W * C), lambda n, r: (n, 0, 0)),
            pl.BlockSpec((THo, H), lambda n, r: (r, 0)),
            pl.BlockSpec((W * C, w * C), lambda n, r: (0, 0)),
        ],
        out_specs=pl.BlockSpec((1, THo, w * C), lambda n, r: (n, r, 0)),
        compiler_params=pltpu.CompilerParams(
            dimension_semantics=("parallel", "parallel"),
            vmem_limit_bytes=_VMEM_LIMIT),
    )(xf, rh, rwc)
    return out.reshape(N, h, w, C)


# ------------------------ parameters (deterministic, pre-folded) ------------------------

def init_sim_params(key, c1, c2):
    ks = jax.random.split(key, 10)
    bn_s = 1.0 / math.sqrt(1.0 + BN_EPS)   # eval-mode BN with default running stats
    # TODO(synk): training-mode BatchNorm batch statistics are not reproduced.

    up_w = jax.random.normal(ks[0], (c1, 2, 2, c2), jnp.float32) / math.sqrt(c1 * 4)
    up_b = 0.01 * jax.random.normal(ks[1], (c2,), jnp.float32)
    wl = jax.random.normal(ks[2], (c2, c2), jnp.float32) / math.sqrt(c2)
    bl = 0.01 * jax.random.normal(ks[3], (c2,), jnp.float32)
    wg1 = jax.random.normal(ks[4], (c2, c2), jnp.float32) / math.sqrt(c2)
    bg1 = 0.01 * jax.random.normal(ks[5], (c2,), jnp.float32)
    wg2 = jax.random.normal(ks[6], (c2, c2), jnp.float32) / math.sqrt(c2)
    bg2 = 0.01 * jax.random.normal(ks[7], (c2,), jnp.float32)
    dc1 = jax.random.normal(ks[8], (3, 3, c2, c2), jnp.float32) / math.sqrt(9 * c2)
    dc2 = jax.random.normal(ks[9], (3, 3, c2, c2), jnp.float32) / math.sqrt(9 * c2)

    s = jnp.full((c2,), bn_s, jnp.float32)
    zero = jnp.zeros((c2,), jnp.float32)

    p = {}
    # ConvTranspose2d(k=2,s=2) composed with local_cv's 1x1 conv: (c1, 4*c2), lanes (dy,dx,c)
    wcomb = jnp.einsum("iyxo,oc->iyxc", up_w, wl).reshape(c1, 4 * c2)
    bcomb = (up_b @ wl + bl) * bn_s
    p["wc"] = wcomb.astype(jnp.bfloat16)
    p["sb_loc"] = jnp.stack([jnp.tile(s, 4), jnp.tile(bcomb, 4)])
    # both gate 1x1 convs as one block-diagonal (over column parity dx) matmul:
    # rows (dx, c_in), lanes (k, dx, c_out)
    wg12 = jnp.stack([wg1, wg2], axis=0)
    wgb = jnp.einsum("kab,de->dakeb", wg12, jnp.eye(2, dtype=jnp.float32))
    p["wg"] = wgb.reshape(2 * c2, 4 * c2).astype(jnp.bfloat16)
    p["sb_g"] = jnp.stack([
        jnp.tile(s, 4),
        jnp.concatenate([jnp.tile(bg1 * bn_s, 2), jnp.tile(bg2 * bn_s, 2)]),
    ])
    # DoubleConv weights packed (dy, c_in, dx*c_out): the 3 horizontal taps share a matmul
    p["dc1_w"] = dc1.transpose(0, 2, 1, 3).reshape(3, c2, 3 * c2).astype(jnp.bfloat16)
    p["dc1_sb"] = jnp.stack([s, zero])
    p["dc2_w"] = dc2.transpose(0, 2, 1, 3).reshape(3, c2, 3 * c2).astype(jnp.bfloat16)
    p["dc2_sb"] = jnp.stack([s, zero])
    # raw pieces, only used by the rare odd-size (F.pad != 0) fallback path
    p["raw"] = {"up_w4": up_w.reshape(c1, 4 * c2), "up_b4": jnp.tile(up_b, 4),
                "wl": wl, "bl": bl, "wg1": wg1, "bg1": bg1, "wg2": wg2, "bg2": bg2}
    return p


def init_decoder_params(key, encoder_channels=(64, 128, 256, 512), class_num=6):
    ec = list(reversed(list(encoder_channels)))
    k1, k2, k3, k4, k5 = jax.random.split(key, 5)
    final_w = jax.random.normal(k4, (ec[3], class_num), jnp.float32) / math.sqrt(ec[3])
    return {
        "up1": init_sim_params(k1, ec[0], ec[1]),
        "up2": init_sim_params(k2, ec[1], ec[2]),
        "up3": init_sim_params(k3, ec[2], ec[3]),
        "final_w": final_w.astype(jnp.bfloat16),
        "final_b": 0.01 * jax.random.normal(k5, (class_num,), jnp.float32),
    }


# ------------------------------------- forward pass -------------------------------------

def _sim_gate_fallback(p, x1, x2):
    # TODO(synk): odd-size F.pad path (H2 != 2*H1 or W2 != 2*W1) runs in plain JAX,
    # not as a Pallas kernel (never hit for power-of-two feature pyramids).
    r = p["raw"]
    bn_s = 1.0 / math.sqrt(1.0 + BN_EPS)
    N, H1, W1, C1 = x1.shape
    _, H2, W2, C2 = x2.shape
    up = x1.reshape(-1, C1).astype(jnp.float32) @ r["up_w4"] + r["up_b4"]
    up = up.reshape(N, H1, W1, 2, 2, C2).transpose(0, 1, 3, 2, 4, 5)
    up = up.reshape(N, 2 * H1, 2 * W1, C2)
    dy, dx = H2 - 2 * H1, W2 - 2 * W1
    up = jnp.pad(up, ((0, 0), (dy // 2, dy - dy // 2), (dx // 2, dx - dx // 2), (0, 0)))
    loc = (up.reshape(-1, C2) @ r["wl"] + r["bl"]) * bn_s
    x2f = x2.reshape(-1, C2).astype(jnp.float32)
    g1 = jax.nn.sigmoid((x2f @ r["wg1"] + r["bg1"]) * bn_s)
    g2 = (x2f @ r["wg2"] + r["bg2"]) * bn_s
    return (g1 * loc + g2).reshape(N, H2, W2, C2).astype(jnp.bfloat16)


def sim_apply(p, x1, x2, proj=None):
    """SIM.forward; NHWC activations, bf16 between kernels."""
    N, H1, W1, C1 = x1.shape
    _, H2, W2, C2 = x2.shape
    if H2 == 2 * H1 and W2 == 2 * W1:
        f = sim_gate(x1, x2, p)
    else:
        f = _sim_gate_fallback(p, x1, x2)
    f = conv3x3_bn_relu(f, p["dc1_w"], p["dc1_sb"])
    if proj is None:
        return conv3x3_bn_relu(f, p["dc2_w"], p["dc2_sb"])
    return conv3x3_bn_relu(f, p["dc2_w"], p["dc2_sb"],
                           proj_w=proj[0], proj_b=proj[1], out_dtype=jnp.float32)


def sim_decoder_forward(params, feats_nchw, h, w):
    """SIMDecoder.forward (msadd=False path). feats_nchw = (x2, x3, x4, x5) in NCHW."""
    x2, x3, x4, x5 = [jnp.transpose(f, (0, 2, 3, 1)).astype(jnp.bfloat16)
                      for f in feats_nchw]
    x = sim_apply(params["up1"], x5, x4)
    x = sim_apply(params["up2"], x, x3)
    x = sim_apply(params["up3"], x, x2,
                  proj=(params["final_w"], params["final_b"]))   # fused final 1x1 conv
    out = bilinear_resize_nhwc(x, h, w)                          # (N, h, w, cls) f32
    return jnp.transpose(out, (0, 3, 1, 2))                      # NCHW like PyTorch


# ----------------------------------------- main -----------------------------------------

if __name__ == "__main__":
    key = jax.random.PRNGKey(0)
    enc = (16, 32, 64, 128)    # small stand-in for the default (64, 128, 256, 512)
    class_num = 6
    N = 2
    pk, k2, k3, k4, k5 = jax.random.split(key, 5)
    params = init_decoder_params(pk, enc, class_num)

    # Encoder-feature pyramid (NCHW, like PyTorch)
    x2 = jax.random.normal(k2, (N, enc[0], 16, 16), jnp.float32)
    x3 = jax.random.normal(k3, (N, enc[1], 8, 8), jnp.float32)
    x4 = jax.random.normal(k4, (N, enc[2], 4, 4), jnp.float32)
    x5 = jax.random.normal(k5, (N, enc[3], 2, 2), jnp.float32)
    h, w = 64, 64

    out = sim_decoder_forward(params, (x2, x3, x4, x5), h, w)
    out = jax.block_until_ready(out)
    assert out.shape == (N, class_num, h, w), out.shape
    assert bool(jnp.all(jnp.isfinite(out)))
    print("KERNEL_OK")
</pallas_src>

<mosaic_0001>
module attributes {stable_mosaic.version = 11 : i64} {
  func.func @_sim_gate_kernel(%arg0: i32, %arg1: i32, %arg2: memref<1x2x2x128xbf16, #tpu.memory_space<vmem>>, %arg3: memref<1x2x2x2x128xbf16, #tpu.memory_space<vmem>>, %arg4: memref<128x256xbf16, #tpu.memory_space<vmem>>, %arg5: memref<128x256xbf16, #tpu.memory_space<vmem>>, %arg6: memref<2x256xf32, #tpu.memory_space<vmem>>, %arg7: memref<2x256xf32, #tpu.memory_space<vmem>>, %arg8: memref<1x2x2x2x128xbf16, #tpu.memory_space<vmem>>) attributes {dimension_semantics = [#tpu.dimension_semantics<parallel>, #tpu.dimension_semantics<parallel>], iteration_bounds = array<i64: 2, 1>, scalar_prefetch = 0 : i64, scratch_operands = 0 : i64, tpu.core_type = #tpu.core_type<tc>, window_params = [{transform_indices = @transform_0, window_bounds = array<i64: 1, 2, 2, 128>}, {transform_indices = @transform_1, window_bounds = array<i64: 1, 2, 2, 2, 128>}, {pipeline_mode = #tpu.pipeline_mode<synchronous>, transform_indices = @transform_2, window_bounds = array<i64: 128, 256>}, {pipeline_mode = #tpu.pipeline_mode<synchronous>, transform_indices = @transform_3, window_bounds = array<i64: 128, 256>}, {pipeline_mode = #tpu.pipeline_mode<synchronous>, transform_indices = @transform_4, window_bounds = array<i64: 2, 256>}, {pipeline_mode = #tpu.pipeline_mode<synchronous>, transform_indices = @transform_5, window_bounds = array<i64: 2, 256>}, {transform_indices = @transform_6, window_bounds = array<i64: 1, 2, 2, 2, 128>}]} {
    %c0 = arith.constant 0 : index
    %c0_0 = arith.constant 0 : index
    %c0_1 = arith.constant 0 : index
    %c0_2 = arith.constant 0 : index
    %0 = vector.load %arg2[%c0, %c0_0, %c0_1, %c0_2] : memref<1x2x2x128xbf16, #tpu.memory_space<vmem>>, vector<1x2x2x128xbf16>
    %1 = vector.shape_cast %0 : vector<1x2x2x128xbf16> to vector<2x2x128xbf16>
    %2 = vector.shape_cast %1 : vector<2x2x128xbf16> to vector<4x128xbf16>
    %c0_3 = arith.constant 0 : index
    %c0_4 = arith.constant 0 : index
    %3 = vector.load %arg4[%c0_3, %c0_4] : memref<128x256xbf16, #tpu.memory_space<vmem>>, vector<128x256xbf16>
    %cst = arith.constant dense<0.000000e+00> : vector<4x256xf32>
    %4 = tpu.matmul %2, %3, %cst {dimension_numbers = #tpu.dot_dimension_numbers<[1], [0], [0], [1], [0, 0, 1, 1], [], []>} : vector<4x128xbf16>, vector<128x256xbf16>, vector<4x256xf32> -> vector<4x256xf32>
    %c0_5 = arith.constant 0 : index
    %c0_6 = arith.constant 0 : index
    %5 = vector.load %arg6[%c0_5, %c0_6] : memref<2x256xf32, #tpu.memory_space<vmem>>, vector<1x256xf32>
    %6 = vector.broadcast %5 : vector<1x256xf32> to vector<4x256xf32>
    %7 = arith.mulf %4, %6 : vector<4x256xf32>
    %c1 = arith.constant 1 : index
    %c0_7 = arith.constant 0 : index
    %8 = vector.load %arg6[%c1, %c0_7] : memref<2x256xf32, #tpu.memory_space<vmem>>, vector<1x256xf32>
    %9 = vector.broadcast %8 : vector<1x256xf32> to vector<4x256xf32>
    %10 = arith.addf %7, %9 : vector<4x256xf32>
    %11 = vector.extract_strided_slice %10 {offsets = [0, 0], sizes = [4, 128], strides = [1, 1]} : vector<4x256xf32> to vector<4x128xf32>
    %c0_8 = arith.constant 0 : index
    %c0_9 = arith.constant 0 : index
    %c0_10 = arith.constant 0 : index
    %c0_11 = arith.constant 0 : index
    %c0_12 = arith.constant 0 : index
    %12 = vector.load %arg3[%c0_8, %c0_9, %c0_10, %c0_11, %c0_12] : memref<1x2x2x2x128xbf16, #tpu.memory_space<vmem>>, vector<1x2x1x2x128xbf16>
    %13 = vector.shape_cast %12 : vector<1x2x1x2x128xbf16> to vector<2x2x128xbf16>
    %14 = vector.shape_cast %13 : vector<2x2x128xbf16> to vector<4x128xbf16>
    %c0_13 = arith.constant 0 : index
    %c0_14 = arith.constant 0 : index
    %15 = vector.load %arg5[%c0_13, %c0_14] : memref<128x256xbf16, #tpu.memory_space<vmem>>, vector<128x256xbf16>
    %cst_15 = arith.constant dense<0.000000e+00> : vector<4x256xf32>
    %16 = tpu.matmul %14, %15, %cst_15 {dimension_numbers = #tpu.dot_dimension_numbers<[1], [0], [0], [1], [0, 0, 1, 1], [], []>} : vector<4x128xbf16>, vector<128x256xbf16>, vector<4x256xf32> -> vector<4x256xf32>
    %c0_16 = arith.constant 0 : index
    %c0_17 = arith.constant 0 : index
    %17 = vector.load %arg7[%c0_16, %c0_17] : memref<2x256xf32, #tpu.memory_space<vmem>>, vector<1x256xf32>
    %18 = vector.broadcast %17 : vector<1x256xf32> to vector<4x256xf32>
    %19 = arith.mulf %16, %18 : vector<4x256xf32>
    %c1_18 = arith.constant 1 : index
    %c0_19 = arith.constant 0 : index
    %20 = vector.load %arg7[%c1_18, %c0_19] : memref<2x256xf32, #tpu.memory_space<vmem>>, vector<1x256xf32>
    %21 = vector.broadcast %20 : vector<1x256xf32> to vector<4x256xf32>
    %22 = arith.addf %19, %21 : vector<4x256xf32>
    %23 = vector.extract_strided_slice %22 {offsets = [0, 0], sizes = [4, 128], strides = [1, 1]} : vector<4x256xf32> to vector<4x128xf32>
    %24 = arith.negf %23 : vector<4x128xf32>
    %25 = math.exp %24 : vector<4x128xf32>
    %cst_20 = arith.constant 1.000000e+00 : f32
    %26 = vector.broadcast %cst_20 : f32 to vector<4x128xf32>
    %27 = arith.addf %26, %25 : vector<4x128xf32>
    %28 = arith.divf %26, %27 : vector<4x128xf32>
    %29 = vector.extract_strided_slice %22 {offsets = [0, 128], sizes = [4, 128], strides = [1, 1]} : vector<4x256xf32> to vector<4x128xf32>
    %30 = arith.mulf %28, %11 : vector<4x128xf32>
    %31 = arith.addf %30, %29 : vector<4x128xf32>
    %32 = vector.shape_cast %31 : vector<4x128xf32> to vector<2x2x128xf32>
    %33 = arith.truncf %32 : vector<2x2x128xf32> to vector<2x2x128xbf16>
    %c0_21 = arith.constant 0 : index
    %c0_22 = arith.constant 0 : index
    %c0_23 = arith.constant 0 : index
    %c0_24 = arith.constant 0 : index
    %c0_25 = arith.constant 0 : index
    %34 = vector.load %arg8[%c0_21, %c0_22, %c0_23, %c0_24, %c0_25] : memref<1x2x2x2x128xbf16, #tpu.memory_space<vmem>>, vector<1x2x1x2x128xbf16>
    %35 = vector.shape_cast %34 : vector<1x2x1x2x128xbf16> to vector<2x2x128xbf16>
    %36 = vector.shape_cast %33 : vector<2x2x128xbf16> to vector<1x2x1x2x128xbf16>
    tpu.vector_store %arg8[%c0_21, %c0_22, %c0_23, %c0_24, %c0_25], %36 {strides = array<i32>} : memref<1x2x2x2x128xbf16, #tpu.memory_space<vmem>>, vector<1x2x1x2x128xbf16>,
    %37 = vector.extract_strided_slice %10 {offsets = [0, 128], sizes = [4, 128], strides = [1, 1]} : vector<4x256xf32> to vector<4x128xf32>
    %c0_26 = arith.constant 0 : index
    %c0_27 = arith.constant 0 : index
    %c1_28 = arith.constant 1 : index
    %c0_29 = arith.constant 0 : index
    %c0_30 = arith.constant 0 : index
    %38 = vector.load %arg3[%c0_26, %c0_27, %c1_28, %c0_29, %c0_30] : memref<1x2x2x2x128xbf16, #tpu.memory_space<vmem>>, vector<1x2x1x2x128xbf16>
    %39 = vector.shape_cast %38 : vector<1x2x1x2x128xbf16> to vector<2x2x128xbf16>
    %40 = vector.shape_cast %39 : vector<2x2x128xbf16> to vector<4x128xbf16>
    %c0_31 = arith.constant 0 : index
    %c0_32 = arith.constant 0 : index
    %41 = vector.load %arg5[%c0_31, %c0_32] : memref<128x256xbf16, #tpu.memory_space<vmem>>, vector<128x256xbf16>
    %cst_33 = arith.constant dense<0.000000e+00> : vector<4x256xf32>
    %42 = tpu.matmul %40, %41, %cst_33 {dimension_numbers = #tpu.dot_dimension_numbers<[1], [0], [0], [1], [0, 0, 1, 1], [], []>} : vector<4x128xbf16>, vector<128x256xbf16>, vector<4x256xf32> -> vector<4x256xf32>
    %c0_34 = arith.constant 0 : index
    %c0_35 = arith.constant 0 : index
    %43 = vector.load %arg7[%c0_34, %c0_35] : memref<2x256xf32, #tpu.memory_space<vmem>>, vector<1x256xf32>
    %44 = vector.broadcast %43 : vector<1x256xf32> to vector<4x256xf32>
    %45 = arith.mulf %42, %44 : vector<4x256xf32>
    %c1_36 = arith.constant 1 : index
    %c0_37 = arith.constant 0 : index
    %46 = vector.load %arg7[%c1_36, %c0_37] : memref<2x256xf32, #tpu.memory_space<vmem>>, vector<1x256xf32>
    %47 = vector.broadcast %46 : vector<1x256xf32> to vector<4x256xf32>
    %48 = arith.addf %45, %47 : vector<4x256xf32>
    %49 = vector.extract_strided_slice %48 {offsets = [0, 0], sizes = [4, 128], strides = [1, 1]} : vector<4x256xf32> to vector<4x128xf32>
    %50 = arith.negf %49 : vector<4x128xf32>
    %51 = math.exp %50 : vector<4x128xf32>
    %cst_38 = arith.constant 1.000000e+00 : f32
    %52 = vector.broadcast %cst_38 : f32 to vector<4x128xf32>
    %53 = arith.addf %52, %51 : vector<4x128xf32>
    %54 = arith.divf %52, %53 : vector<4x128xf32>
    %55 = vector.extract_strided_slice %48 {offsets = [0, 128], sizes = [4, 128], strides = [1, 1]} : vector<4x256xf32> to vector<4x128xf32>
    %56 = arith.mulf %54, %37 : vector<4x128xf32>
    %57 = arith.addf %56, %55 : vector<4x128xf32>
    %58 = vector.shape_cast %57 : vector<4x128xf32> to vector<2x2x128xf32>
    %59 = arith.truncf %58 : vector<2x2x128xf32> to vector<2x2x128xbf16>
    %c0_39 = arith.constant 0 : index
    %c0_40 = arith.constant 0 : index
    %c1_41 = arith.constant 1 : index
    %c0_42 = arith.constant 0 : index
    %c0_43 = arith.constant 0 : index
    %60 = vector.load %arg8[%c0_39, %c0_40, %c1_41, %c0_42, %c0_43] : memref<1x2x2x2x128xbf16, #tpu.memory_space<vmem>>, vector<1x2x1x2x128xbf16>
    %61 = vector.shape_cast %60 : vector<1x2x1x2x128xbf16> to vector<2x2x128xbf16>
    %62 = vector.shape_cast %59 : vector<2x2x128xbf16> to vector<1x2x1x2x128xbf16>
    tpu.vector_store %arg8[%c0_39, %c0_40, %c1_41, %c0_42, %c0_43], %62 {strides = array<i32>} : memref<1x2x2x2x128xbf16, #tpu.memory_space<vmem>>, vector<1x2x1x2x128xbf16>,
    return
  }
  func.func @transform_0(%arg0: i32, %arg1: i32) -> (i32, i32, i32, i32) {
    %c0_i32 = arith.constant 0 : i32
    %c0_i32_0 = arith.constant 0 : i32
    %c0_i32_1 = arith.constant 0 : i32
    return %arg0, %arg1, %c0_i32, %c0_i32_0 : i32, i32, i32, i32
  }
  func.func @transform_1(%arg0: i32, %arg1: i32) -> (i32, i32, i32, i32, i32) {
    %c0_i32 = arith.constant 0 : i32
    %c0_i32_0 = arith.constant 0 : i32
    %c0_i32_1 = arith.constant 0 : i32
    %c0_i32_2 = arith.constant 0 : i32
    return %arg0, %arg1, %c0_i32, %c0_i32_0, %c0_i32_1 : i32, i32, i32, i32, i32
  }
  func.func @transform_2(%arg0: i32, %arg1: i32) -> (i32, i32) {
    %c0_i32 = arith.constant 0 : i32
    %c0_i32_0 = arith.constant 0 : i32
    %c0_i32_1 = arith.constant 0 : i32
    return %c0_i32, %c0_i32_0 : i32, i32
  }
  func.func @transform_3(%arg0: i32, %arg1: i32) -> (i32, i32) {
    %c0_i32 = arith.constant 0 : i32
    %c0_i32_0 = arith.constant 0 : i32
    %c0_i32_1 = arith.constant 0 : i32
    return %c0_i32, %c0_i32_0 : i32, i32
  }
  func.func @transform_4(%arg0: i32, %arg1: i32) -> (i32, i32) {
    %c0_i32 = arith.constant 0 : i32
    %c0_i32_0 = arith.constant 0 : i32
    %c0_i32_1 = arith.constant 0 : i32
    return %c0_i32, %c0_i32_0 : i32, i32
  }
  func.func @transform_5(%arg0: i32, %arg1: i32) -> (i32, i32) {
    %c0_i32 = arith.constant 0 : i32
    %c0_i32_0 = arith.constant 0 : i32
    %c0_i32_1 = arith.constant 0 : i32
    return %c0_i32, %c0_i32_0 : i32, i32
  }
  func.func @transform_6(%arg0: i32, %arg1: i32) -> (i32, i32, i32, i32, i32) {
    %c0_i32 = arith.constant 0 : i32
    %c0_i32_0 = arith.constant 0 : i32
    %c0_i32_1 = arith.constant 0 : i32
    %c0_i32_2 = arith.constant 0 : i32
    return %arg0, %arg1, %c0_i32, %c0_i32_0, %c0_i32_1 : i32, i32, i32, i32, i32
  }
}

</mosaic_0001>

<llo_original>
// kernel: tpu_custom_call.1
$region0: #{tpu_custom_call.1}
  #allocation0 [shape = 'u32[]', space=smem, size = 0x4, offset = 0x4, fixed_abs, tag = 'smem constant byte address 0x4 - core index']
  #allocation1 [shape = 'u32[144,128]{1,0:T(1,128)}', space=vmem, size = 0x12000, scoped, tag = 'internal scratch']
  %s0 = inlined_call_operand.hbm [shape: bf16[2,2,2,128], index: 0, kind: input, shape index: {}]
  %s1 = inlined_call_operand.hbm [shape: bf16[2,2,2,2,128], index: 1, kind: input, shape index: {}]
  %s2 = inlined_call_operand.hbm [shape: bf16[128,256], index: 2, kind: input, shape index: {}]
  %s3 = inlined_call_operand.hbm [shape: bf16[128,256], index: 3, kind: input, shape index: {}]
  %s4 = inlined_call_operand.vmem [shape: f32[2,256], index: 4, kind: input, shape index: {}]
  %s5 = inlined_call_operand.vmem [shape: f32[2,256], index: 5, kind: input, shape index: {}]
  %s6 = inlined_call_operand.hbm [shape: bf16[2,2,2,2,128], index: 6, kind: output, shape index: {}]
  %s7 = sld [smem:[#allocation0]]
  $region73: #{tpu_custom_call.1} parent=0
    _
  %s9 = ssub.s32 1, %s7
  %s10 = scalar_select 0, %s9, %s7
  $region1: #{tpu_custom_call.1} parent=0
    #allocation2 [shape = 'u8[2048]{0}', space=vmem, size = 0x800, scoped, tag = 'input window, operand 0']
    #allocation3 [shape = 's32[2]{0}', space=sflag, size = 0x8, scoped, tag = 'scoped memory for tpu_custom_call.1']
    #allocation4 [shape = 's32[2]{0}', space=sflag, size = 0x8, scoped, tag = 'scoped memory for tpu_custom_call.1']
    #allocation5 [shape = 'u8[4096]{0}', space=vmem, size = 0x1000, scoped, tag = 'input window, operand 1']
    #allocation6 [shape = 's32[2]{0}', space=sflag, size = 0x8, scoped, tag = 'scoped memory for tpu_custom_call.1']
    #allocation7 [shape = 'u8[65536]{0}', space=vmem, size = 0x10000, scoped, tag = 'input window, operand 2, single buffered']
    #allocation8 [shape = 'u8[65536]{0}', space=vmem, size = 0x10000, scoped, tag = 'input window, operand 3, single buffered']
    #allocation9 [shape = 's32[1]{0}', space=sflag, size = 0x4, scoped, tag = 'scoped memory for tpu_custom_call.1']
    #allocation10 [shape = 'u8[4096]{0}', space=vmem, size = 0x1000, scoped, tag = 'output window, operand 0']
    %11 = vsyncpa [#allocation3], 0
    %s12 = scalar_lea.sflag [#allocation3], 1
    %13 = vsyncpa %s12, 0
    %14 = vsyncpa [#allocation6], 0
    %s15 = scalar_lea.sflag [#allocation6], 1
    %16 = vsyncpa %s15, 0
    %17 = vsyncpa [#allocation9], 0
    %18 = vsyncpa [#allocation4], 0
    %s19 = scalar_lea.sflag [#allocation4], 1
    %20 = vsyncpa %s19, 0
    loop: start=0, step=1, limit=4
    $region2: #{tpu_custom_call.1} parent=1 // loop_pre_header
      _
    $region3: #{tpu_custom_call.1} parent=1 // loop_header
      %s22 = sphi 0, %s26
      %p23 = scmp.ge.s32.totalorder %s22, 4
      %s29 = sphi 0, %s41
      %s30 = sphi 0, %s37
      %s31 = sphi 0, %s29
      %s32 = sphi 0, %s30
      %s33 = sphi 0, %s31
      %s34 = sphi 0, %s32
      %s46 = sphi 0, %s48
      %s49 = sphi 0, %s46
      %s50 = sphi 0, %s49
      %s66 = sphi 0, %s50
      %s74 = sphi 0, %s76
      %s77 = sphi 0, %s74
      %s78 = sphi 0, %s77
      %s94 = sphi 0, %s78
      %s98 = sphi 0, %s98
      %s100 = sphi 0, %s98
      %s101 = sphi 0, %s100
      %s115 = sphi 0, %s101
      %s119 = sphi 0, %s119
      %s121 = sphi 0, %s119
      %s122 = sphi 0, %s121
      %s136 = sphi 0, %s122
      %s140 = sphi 0, %s140
      %s142 = sphi 0, %s140
      %s143 = sphi 0, %s142
      %s157 = sphi 0, %s143
      %s161 = sphi 0, %s161
      %s163 = sphi 0, %s161
      %s164 = sphi 0, %s163
      %s178 = sphi 0, %s164
      %s186 = sphi 0, %s188
      %s189 = sphi 0, %s186
      %s190 = sphi 0, %s189
      %s206 = sphi 0, %s190
    $region4: #{tpu_custom_call.1} parent=1 // loop_header_branch
      %25 = sbr.rel (%p23) target = $region8
    $region5: #{tpu_custom_call.1} parent=1 // loop_body
      %s27 = ssub.s32 %s22, 1
      %s28 = ssub.s32 %s22, 2
      %s35 = sadd.s32 1, %s30
      %p36 = scmp.ge.s32.totalorder %s35, 1
      %s37 = scalar_select %p36, 0, %s35
      %s38 = sadd.s32 1, %s29
      %s39 = scalar_select %p36, %s38, %s29
      %p40 = scmp.ge.s32.totalorder %s39, 2
      %s41 = scalar_select %p40, 0, %s39
      %s42 = ssub.s32 %s29, %s41
      %s43 = ssub.s32 %s30, %s37
      %s44 = sor.u32 %s42, %s43
      %p45 = scmp.eq.s32.totalorder %s44, 0
      %s47 = sadd.s32 %s46, 1
      %s48 = scalar_select %p45, %s46, %s47
      %p51 = pneg %p45
      %p52 = scmp.eq.s32.totalorder %s22, 1
      %p53 = por %p51, %p52
      %p54 = scmp.ne.s32.totalorder %s46, %s49
      %p55 = scmp.eq.s32.totalorder %s22, 0
      %p56 = por %p54, %p55
      %p57 = scmp.ne.s32.totalorder %s46, %s49
      %p58 = scmp.eq.s32.totalorder %s27, 1
      %p59 = por %p57, %p58
      %p60 = scmp.ne.s32.totalorder %s49, %s50
      %p61 = scmp.eq.s32.totalorder %s27, 0
      %p62 = por %p60, %p61
      %p63 = scmp.ne.s32.totalorder %s49, %s50
      %p64 = scmp.eq.s32.totalorder %s28, 1
      %p65 = por %p63, %p64
      %p67 = scmp.ne.s32.totalorder %s50, %s66
      %p68 = scmp.eq.s32.totalorder %s28, 0
      %p69 = por %p67, %p68
      %s70 = ssub.s32 %s29, %s41
      %s71 = ssub.s32 %s30, %s37
      %s72 = sor.u32 %s70, %s71
      %p73 = scmp.eq.s32.totalorder %s72, 0
      %s75 = sadd.s32 %s74, 1
      %s76 = scalar_select %p73, %s74, %s75
      %p79 = pneg %p73
      %p80 = scmp.eq.s32.totalorder %s22, 1
      %p81 = por %p79, %p80
      %p82 = scmp.ne.s32.totalorder %s74, %s77
      %p83 = scmp.eq.s32.totalorder %s22, 0
      %p84 = por %p82, %p83
      %p85 = scmp.ne.s32.totalorder %s74, %s77
      %p86 = scmp.eq.s32.totalorder %s27, 1
      %p87 = por %p85, %p86
      %p88 = scmp.ne.s32.totalorder %s77, %s78
      %p89 = scmp.eq.s32.totalorder %s27, 0
      %p90 = por %p88, %p89
      %p91 = scmp.ne.s32.totalorder %s77, %s78
      %p92 = scmp.eq.s32.totalorder %s28, 1
      %p93 = por %p91, %p92
      %p95 = scmp.ne.s32.totalorder %s78, %s94
      %p96 = scmp.eq.s32.totalorder %s28, 0
      %p97 = por %p95, %p96
      %s99 = sadd.s32 %s98, 1
      %p102 = scmp.eq.s32.totalorder %s22, 1
      %p103 = scmp.ne.s32.totalorder %s98, %s100
      %p104 = scmp.eq.s32.totalorder %s22, 0
      %p105 = por %p103, %p104
      %p106 = scmp.ne.s32.totalorder %s98, %s100
      %p107 = scmp.eq.s32.totalorder %s27, 1
      %p108 = por %p106, %p107
      %p109 = scmp.ne.s32.totalorder %s100, %s101
      %p110 = scmp.eq.s32.totalorder %s27, 0
      %p111 = por %p109, %p110
      %p112 = scmp.ne.s32.totalorder %s100, %s101
      %p113 = scmp.eq.s32.totalorder %s28, 1
      %p114 = por %p112, %p113
      %p116 = scmp.ne.s32.totalorder %s101, %s115
      %p117 = scmp.eq.s32.totalorder %s28, 0
      %p118 = por %p116, %p117
      %s120 = sadd.s32 %s119, 1
      %p123 = scmp.eq.s32.totalorder %s22, 1
      %p124 = scmp.ne.s32.totalorder %s119, %s121
      %p125 = scmp.eq.s32.totalorder %s22, 0
      %p126 = por %p124, %p125
      %p127 = scmp.ne.s32.totalorder %s119, %s121
      %p128 = scmp.eq.s32.totalorder %s27, 1
      %p129 = por %p127, %p128
      %p130 = scmp.ne.s32.totalorder %s121, %s122
      %p131 = scmp.eq.s32.totalorder %s27, 0
      %p132 = por %p130, %p131
      %p133 = scmp.ne.s32.totalorder %s121, %s122
      %p134 = scmp.eq.s32.totalorder %s28, 1
      %p135 = por %p133, %p134
      %p137 = scmp.ne.s32.totalorder %s122, %s136
      %p138 = scmp.eq.s32.totalorder %s28, 0
      %p139 = por %p137, %p138
      %s141 = sadd.s32 %s140, 1
      %p144 = scmp.eq.s32.totalorder %s22, 1
      %p145 = scmp.ne.s32.totalorder %s140, %s142
      %p146 = scmp.eq.s32.totalorder %s22, 0
      %p147 = por %p145, %p146
      %p148 = scmp.ne.s32.totalorder %s140, %s142
      %p149 = scmp.eq.s32.totalorder %s27, 1
      %p150 = por %p148, %p149
      %p151 = scmp.ne.s32.totalorder %s142, %s143
      %p152 = scmp.eq.s32.totalorder %s27, 0
      %p153 = por %p151, %p152
      %p154 = scmp.ne.s32.totalorder %s142, %s143
      %p155 = scmp.eq.s32.totalorder %s28, 1
      %p156 = por %p154, %p155
      %p158 = scmp.ne.s32.totalorder %s143, %s157
      %p159 = scmp.eq.s32.totalorder %s28, 0
      %p160 = por %p158, %p159
      %s162 = sadd.s32 %s161, 1
      %p165 = scmp.eq.s32.totalorder %s22, 1
      %p166 = scmp.ne.s32.totalorder %s161, %s163
      %p167 = scmp.eq.s32.totalorder %s22, 0
      %p168 = por %p166, %p167
      %p169 = scmp.ne.s32.totalorder %s161, %s163
      %p170 = scmp.eq.s32.totalorder %s27, 1
      %p171 = por %p169, %p170
      %p172 = scmp.ne.s32.totalorder %s163, %s164
      %p173 = scmp.eq.s32.totalorder %s27, 0
      %p174 = por %p172, %p173
      %p175 = scmp.ne.s32.totalorder %s163, %s164
      %p176 = scmp.eq.s32.totalorder %s28, 1
      %p177 = por %p175, %p176
      %p179 = scmp.ne.s32.totalorder %s164, %s178
      %p180 = scmp.eq.s32.totalorder %s28, 0
      %p181 = por %p179, %p180
      %s182 = ssub.s32 %s29, %s41
      %s183 = ssub.s32 %s30, %s37
      %s184 = sor.u32 %s182, %s183
      %p185 = scmp.eq.s32.totalorder %s184, 0
      %s187 = sadd.s32 %s186, 1
      %s188 = scalar_select %p185, %s186, %s187
      %p191 = pneg %p185
      %p192 = scmp.eq.s32.totalorder %s22, 1
      %p193 = por %p191, %p192
      %p194 = scmp.ne.s32.totalorder %s186, %s189
      %p195 = scmp.eq.s32.totalorder %s22, 0
      %p196 = por %p194, %p195
      %p197 = scmp.ne.s32.totalorder %s186, %s189
      %p198 = scmp.eq.s32.totalorder %s27, 1
      %p199 = por %p197, %p198
      %p200 = scmp.ne.s32.totalorder %s189, %s190
      %p201 = scmp.eq.s32.totalorder %s27, 0
      %p202 = por %p200, %p201
      %p203 = scmp.ne.s32.totalorder %s189, %s190
      %p204 = scmp.eq.s32.totalorder %s28, 1
      %p205 = por %p203, %p204
      %p207 = scmp.ne.s32.totalorder %s190, %s206
      %p208 = scmp.eq.s32.totalorder %s28, 0
      %p209 = por %p207, %p208
      %p210 = scmp.le.s32.totalorder 1, %s22
      %p211 = scmp.lt.s32.totalorder %s22, 3
      %p212 = pnand %p210, %p211
      %p213 = pneg %p212
      // Predicated region
      $region9: #{tpu_custom_call.1} parent=5 // pred_check
        _
      $region10: #{tpu_custom_call.1} parent=5 // pred_check_branch
        %215 = sbr.rel (%p212) target = $region12
      $region11: #{tpu_custom_call.1} parent=5 // pred_region
        %s216 = ssub.s32 %s22, 1
        // Predicated region
        $region13: #{tpu_custom_call.1} parent=11 // pred_check
          %p217 = pneg %p111
        $region14: #{tpu_custom_call.1} parent=11 // pred_check_branch
          %219 = sbr.rel (%p217) target = $region16
        $region15: #{tpu_custom_call.1} parent=11 // pred_region
          %s221 = ssub.s32 2048, 2048
          %222 = vsyncadd [#allocation6], %s221
          %s223 = sshll.u32 [#allocation7], 4
          %s224 = int_to_ptr.vmem [resolvable:$true] %s223
          %229 = dma.hbm_to_vmem [thread:$0]  %s2, 2048, %s224, [#allocation6], 128, 128, 8
        $region16: #{tpu_custom_call.1} parent=11 // pred_fallthru
          _
        // Predicated region
        $region17: #{tpu_custom_call.1} parent=11 // pred_check
          %p230 = pneg %p132
        $region18: #{tpu_custom_call.1} parent=11 // pred_check_branch
          %232 = sbr.rel (%p230) target = $region20
        $region19: #{tpu_custom_call.1} parent=11 // pred_region
          %s234 = ssub.s32 2048, 2048
          %235 = vsyncadd [#allocation9], %s234
          %s236 = sshll.u32 [#allocation8], 4
          %s237 = int_to_ptr.vmem [resolvable:$true] %s236
          %242 = dma.hbm_to_vmem [thread:$0]  %s3, 2048, %s237, [#allocation9], 128, 128, 8
        $region20: #{tpu_custom_call.1} parent=11 // pred_fallthru
          _
        // Predicated region
        $region21: #{tpu_custom_call.1} parent=11 // pred_check
          %p243 = pneg %p153
        $region22: #{tpu_custom_call.1} parent=11 // pred_check_branch
          %245 = sbr.rel (%p243) target = $region24
        $region23: #{tpu_custom_call.1} parent=11 // pred_region
          _
        $region24: #{tpu_custom_call.1} parent=11 // pred_fallthru
          _
        // Predicated region
        $region25: #{tpu_custom_call.1} parent=11 // pred_check
          %p246 = pneg %p174
        $region26: #{tpu_custom_call.1} parent=11 // pred_check_branch
          %248 = sbr.rel (%p246) target = $region28
        $region27: #{tpu_custom_call.1} parent=11 // pred_region
          _
        $region28: #{tpu_custom_call.1} parent=11 // pred_fallthru
          _
      $region12: #{tpu_custom_call.1} parent=5 // pred_fallthru
        _
      %p249 = scmp.lt.s32.totalorder %s22, 2
      // Predicated region
      $region29: #{tpu_custom_call.1} parent=5 // pred_check
        %p250 = pneg %p249
      $region30: #{tpu_custom_call.1} parent=5 // pred_check_branch
        %252 = sbr.rel (%p250) target = $region32
      $region31: #{tpu_custom_call.1} parent=5 // pred_region
        // Predicated region
        $region33: #{tpu_custom_call.1} parent=31 // pred_check
          %p253 = pneg %p56
        $region34: #{tpu_custom_call.1} parent=31 // pred_check_branch
          %255 = sbr.rel (%p253) target = $region36
        $region35: #{tpu_custom_call.1} parent=31 // pred_region
          %s256 = sand.u32 %s46, 1
          %s257 = scalar_lea.sflag [#allocation3], %s256
          %s258 = sand.u32 %s46, 1
          %s259 = smul.addr %s258, 2
          %s260 = scalar_lea.vmem [#allocation2], %s259
          %s261 = smul.u32 2, %s30
          %s263 = ssub.s32 32, 32
          %264 = vsyncadd %s257, %s263
          %s265 = smul.addr %s29, 2
          %s266 = sadd.s32 %s261, %s265
          %s267 = smul.addr %s266, 16
          %s268 = scalar_lea.hbm %s0, %s267
          %s269 = sshll.u32 %s260, 4
          %s270 = int_to_ptr.vmem [resolvable:$true] %s269
          %275 = dma.hbm_to_vmem [thread:$0]  %s268, 32, %s270, %s257, 16, 16, 1
        $region36: #{tpu_custom_call.1} parent=31 // pred_fallthru
          _
        // Predicated region
        $region37: #{tpu_custom_call.1} parent=31 // pred_check
          %p276 = pneg %p84
        $region38: #{tpu_custom_call.1} parent=31 // pred_check_branch
          %278 = sbr.rel (%p276) target = $region40
        $region39: #{tpu_custom_call.1} parent=31 // pred_region
          %s279 = sand.u32 %s22, 1
          %s280 = scalar_lea.sflag [#allocation6], %s279
          %s281 = sand.u32 %s74, 1
          %s282 = smul.addr %s281, 4
          %s283 = scalar_lea.vmem [#allocation5], %s282
          %s284 = smul.u32 2, %s30
          %s286 = ssub.s32 64, 64
          %287 = vsyncadd %s280, %s286
          %s288 = smul.addr %s284, 2
          %s289 = smul.addr %s29, 4
          %s290 = sadd.s32 %s288, %s289
          %s291 = smul.addr %s290, 16
          %s292 = scalar_lea.hbm %s1, %s291
          %s293 = sshll.u32 %s283, 4
          %s294 = int_to_ptr.vmem [resolvable:$true] %s293
          %299 = dma.hbm_to_vmem [thread:$0]  %s292, 64, %s294, %s280, 16, 16, 1
        $region40: #{tpu_custom_call.1} parent=31 // pred_fallthru
          _
      $region32: #{tpu_custom_call.1} parent=5 // pred_fallthru
        _
      %p300 = scmp.le.s32.totalorder 1, %s22
      %p301 = scmp.lt.s32.totalorder %s22, 3
      %p302 = pnand %p300, %p301
      %p303 = pneg %p302
      // Predicated region
      $region41: #{tpu_custom_call.1} parent=5 // pred_check
        _
      $region42: #{tpu_custom_call.1} parent=5 // pred_check_branch
        %305 = sbr.rel (%p302) target = $region44
      $region43: #{tpu_custom_call.1} parent=5 // pred_region
        %s306 = ssub.s32 %s22, 1
        %s307 = sand.u32 %s49, 1
        %s308 = scalar_lea.sflag [#allocation3], %s307
        %s309 = sand.u32 %s49, 1
        %s310 = smul.addr %s309, 2
        %s311 = scalar_lea.vmem [#allocation2], %s310
        // Predicated region
        $region45: #{tpu_custom_call.1} parent=43 // pred_check
          %p312 = pneg %p62
        $region46: #{tpu_custom_call.1} parent=43 // pred_check_branch
          %314 = sbr.rel (%p312) target = $region48
        $region47: #{tpu_custom_call.1} parent=43 // pred_region
          %315 = dma.done %s308, 32
        $region48: #{tpu_custom_call.1} parent=43 // pred_fallthru
          _
        %s316 = sand.u32 %s27, 1
        %s317 = scalar_lea.sflag [#allocation6], %s316
        %s318 = sand.u32 %s77, 1
        %s319 = smul.addr %s318, 4
        %s320 = scalar_lea.vmem [#allocation5], %s319
        // Predicated region
        $region49: #{tpu_custom_call.1} parent=43 // pred_check
          %p321 = pneg %p90
        $region50: #{tpu_custom_call.1} parent=43 // pred_check_branch
          %323 = sbr.rel (%p321) target = $region52
        $region51: #{tpu_custom_call.1} parent=43 // pred_region
          %324 = dma.done %s317, 64
        $region52: #{tpu_custom_call.1} parent=43 // pred_fallthru
          _
        // Predicated region
        $region53: #{tpu_custom_call.1} parent=43 // pred_check
          %p325 = pneg %p111
        $region54: #{tpu_custom_call.1} parent=43 // pred_check_branch
          %327 = sbr.rel (%p325) target = $region56
        $region55: #{tpu_custom_call.1} parent=43 // pred_region
          %328 = dma.done [#allocation6], 2048
        $region56: #{tpu_custom_call.1} parent=43 // pred_fallthru
          _
        // Predicated region
        $region57: #{tpu_custom_call.1} parent=43 // pred_check
          %p329 = pneg %p132
        $region58: #{tpu_custom_call.1} parent=43 // pred_check_branch
          %331 = sbr.rel (%p329) target = $region60
        $region59: #{tpu_custom_call.1} parent=43 // pred_region
          %332 = dma.done [#allocation9], 2048
        $region60: #{tpu_custom_call.1} parent=43 // pred_fallthru
          _
        %s333 = sand.u32 %s49, 1
        %s334 = scalar_lea.sflag [#allocation3], %s333
        %s335 = sand.u32 %s49, 1
        %s336 = smul.addr %s335, 2
        %s337 = scalar_lea.vmem [#allocation2], %s336
        %p338 = pneg %p62
        %p339 = pneg %p59
        %s340 = sand.u32 %s27, 1
        %s341 = scalar_lea.sflag [#allocation6], %s340
        %s342 = sand.u32 %s77, 1
        %s343 = smul.addr %s342, 4
        %s344 = scalar_lea.vmem [#allocation5], %s343
        %p345 = pneg %p90
        %p346 = pneg %p87
        %p347 = pneg %p111
        %p348 = pneg %p108
        %p349 = pneg %p132
        %p350 = pneg %p129
        %p351 = pneg %p153
        %p352 = pneg %p150
        %p353 = pneg %p174
        %p354 = pneg %p171
        %p355 = pneg %p202
        %p356 = pneg %p199
        %s357 = sand.u32 %s189, 1
        %s358 = scalar_lea.sflag [#allocation4], %s357
        %s359 = sand.u32 %s189, 1
        %s360 = smul.addr %s359, 4
        %s361 = scalar_lea.vmem [#allocation10], %s360
        %s362 = smul.u32 2, %s32
        %s363 = smul.u32 2, %s32
        %s364 = smul.u32 2, %s32
        %v366 = vld [vmem:[%s311] sm:$0x1]
        %v367 = vld [vmem:[%s311 + $0x1] sm:$0x1]
        %v368 = vld [vmem:[#allocation7] sm:$0xff]
        %v369 = vld [vmem:[#allocation7 + $0x8] sm:$0xff]
        %v370 = vld [vmem:[#allocation7 + $0x10] sm:$0xff]
        %v371 = vld [vmem:[#allocation7 + $0x18] sm:$0xff]
        %v372 = vld [vmem:[#allocation7 + $0x20] sm:$0xff]
        %v373 = vld [vmem:[#allocation7 + $0x28] sm:$0xff]
        %v374 = vld [vmem:[#allocation7 + $0x30] sm:$0xff]
        %v375 = vld [vmem:[#allocation7 + $0x38] sm:$0xff]
        %v376 = vld [vmem:[#allocation7 + $0x40] sm:$0xff]
        %v377 = vld [vmem:[#allocation7 + $0x48] sm:$0xff]
        %v378 = vld [vmem:[#allocation7 + $0x50] sm:$0xff]
        %v379 = vld [vmem:[#allocation7 + $0x58] sm:$0xff]
        %v380 = vld [vmem:[#allocation7 + $0x60] sm:$0xff]
        %v381 = vld [vmem:[#allocation7 + $0x68] sm:$0xff]
        %v382 = vld [vmem:[#allocation7 + $0x70] sm:$0xff]
        %v383 = vld [vmem:[#allocation7 + $0x78] sm:$0xff]
        %v386 = vcombine.low %v366, %v367
        %v388 = vunpack.c.l.s4 1966171168
        %v389 = vunpack.c.0.s8 %v388
        %v390 = vlaneseq
        %v391 = vshrl.u32 %v390, 7
        %v392 = vsub.s32 %v389, %v391
        %v393 = vrot.slane %v386, %v392
        %v395 = vunpack.c.l.s4 1966171168
        %v396 = vunpack.c.0.s8 %v395
        %v397 = vlaneseq
        %v398 = vshrl.u32 %v397, 7
        %v399 = vsub.s32 %v396, %v398
        %v400 = vrot.slane %v393, %v399
        %v418 = vunpack.c.l.b16 %v368
        %v419 = vunpack.c.h.b16 %v368
        %v420 = vunpack.c.l.b16 %v369
        %v421 = vunpack.c.h.b16 %v369
        %v422 = vunpack.c.l.b16 %v370
        %v423 = vunpack.c.h.b16 %v370
        %v424 = vunpack.c.l.b16 %v371
        %v425 = vunpack.c.h.b16 %v371
        %v426 = vunpack.c.l.b16 %v372
        %v427 = vunpack.c.h.b16 %v372
        %v428 = vunpack.c.l.b16 %v373
        %v429 = vunpack.c.h.b16 %v373
        %v430 = vunpack.c.l.b16 %v374
        %v431 = vunpack.c.h.b16 %v374
        %v432 = vunpack.c.l.b16 %v375
        %v433 = vunpack.c.h.b16 %v375
        %v434 = vunpack.c.l.b16 %v376
        %v435 = vunpack.c.h.b16 %v376
        %v436 = vunpack.c.l.b16 %v377
        %v437 = vunpack.c.h.b16 %v377
        %v438 = vunpack.c.l.b16 %v378
        %v439 = vunpack.c.h.b16 %v378
        %v440 = vunpack.c.l.b16 %v379
        %v441 = vunpack.c.h.b16 %v379
        %v442 = vunpack.c.l.b16 %v380
        %v443 = vunpack.c.h.b16 %v380
        %v444 = vunpack.c.l.b16 %v381
        %v445 = vunpack.c.h.b16 %v381
        %v446 = vunpack.c.l.b16 %v382
        %v447 = vunpack.c.h.b16 %v382
        %v448 = vunpack.c.l.b16 %v383
        %v449 = vunpack.c.h.b16 %v383
        %v450 = vpack.c.b16 %v420, %v418
        %v451 = vpack.c.b16 %v421, %v419
        %v452 = vpack.c.b16 %v424, %v422
        %v453 = vpack.c.b16 %v425, %v423
        %v454 = vpack.c.b16 %v428, %v426
        %v455 = vpack.c.b16 %v429, %v427
        %v456 = vpack.c.b16 %v432, %v430
        %v457 = vpack.c.b16 %v433, %v431
        %v458 = vpack.c.b16 %v436, %v434
        %v459 = vpack.c.b16 %v437, %v435
        %v460 = vpack.c.b16 %v440, %v438
        %v461 = vpack.c.b16 %v441, %v439
        %v462 = vpack.c.b16 %v444, %v442
        %v463 = vpack.c.b16 %v445, %v443
        %v464 = vpack.c.b16 %v448, %v446
        %v465 = vpack.c.b16 %v449, %v447
        %482 = vmatprep.subr.bf16.mxu0 %v451
        %483 = vmatpush1.bf16.msra.mxu0 %v450
        %484 = vmatprep.subr.bf16.mxu0 %v453
        %485 = vmatpush1.bf16.msra.mxu0 %v452
        %486 = vmatprep.subr.bf16.mxu0 %v455
        %487 = vmatpush1.bf16.msra.mxu0 %v454
        %488 = vmatprep.subr.bf16.mxu0 %v457
        %489 = vmatpush1.bf16.msra.mxu0 %v456
        %490 = vmatprep.subr.bf16.mxu0 %v459
        %491 = vmatpush1.bf16.msra.mxu0 %v458
        %492 = vmatprep.subr.bf16.mxu0 %v461
        %493 = vmatpush1.bf16.msra.mxu0 %v460
        %494 = vmatprep.subr.bf16.mxu0 %v463
        %495 = vmatpush1.bf16.msra.mxu0 %v462
        %496 = vmatprep.subr.bf16.mxu0 %v465
        %497 = vmatpush1.bf16.msra.mxu0 %v464
        %498 = vmatprep.subr.bf16.mxu0 0
        %499 = vmatpush1.bf16.msra.mxu0 0
        %500 = vmatprep.subr.bf16.mxu0 0
        %501 = vmatpush1.bf16.msra.mxu0 0
        %502 = vmatprep.subr.bf16.mxu0 0
        %503 = vmatpush1.bf16.msra.mxu0 0
        %504 = vmatprep.subr.bf16.mxu0 0
        %505 = vmatpush1.bf16.msra.mxu0 0
        %506 = vmatprep.subr.bf16.mxu0 0
        %507 = vmatpush1.bf16.msra.mxu0 0
        %508 = vmatprep.subr.bf16.mxu0 0
        %509 = vmatpush1.bf16.msra.mxu0 0
        %510 = vmatprep.subr.bf16.mxu0 0
        %511 = vmatpush1.bf16.msra.mxu0 0
        %512 = vmatprep.subr.bf16.mxu0 0
        %513 = vmatpush1.bf16.msra.mxu0 0
        %514 = vmatprep.mubr.bf16.mxu0 0
        %515 = vmatmul.mubr.bf16.gmra.mrb[0].mxu0 %v400
        %v516 = vpop.f32.mrb[0].mxu0
        %v517 = vadd.f32 0.0, %v516
        %v518 = vpop.f32.mrb[0].mxu0
        %v519 = vadd.f32 0.0, %v518
        %v520 = vpop.f32.mrb[0].mxu0
        %v521 = vpop.f32.mrb[0].mxu0
        %522 = vdwg.mxu0
        %v523 = vld [vmem:[%s4] ss:$2 sm:$0x3]
        %v525 = vlaneseq
        %v526 = vshrl.u32 %v525, 7
        %v527 = vsub.s32 0, %v526
        %v528 = vrot.slane %v523, %v527
        %v529 = vlaneseq
        %v530 = vshrl.u32 %v529, 7
        %v531 = vsub.s32 1, %v530
        %v532 = vrot.slane %v523, %v531
        %v535 = vmul.f32 %v517, %v528
        %v536 = vmul.f32 %v519, %v532
        %s537 = scalar_lea.vmem %s4, 1
        %v538 = vld [vmem:[%s537] ss:$2 sm:$0x3]
        %v540 = vlaneseq
        %v541 = vshrl.u32 %v540, 7
        %v542 = vsub.s32 0, %v541
        %v543 = vrot.slane %v538, %v542
        %v544 = vlaneseq
        %v545 = vshrl.u32 %v544, 7
        %v546 = vsub.s32 1, %v545
        %v547 = vrot.slane %v538, %v546
        %v550 = vadd.f32 %v535, %v543
        %v551 = vadd.f32 %v536, %v547
        %v552 = vld [vmem:[%s320] sm:$0x1]
        %v553 = vld [vmem:[%s320 + $0x2] sm:$0x1]
        %v554 = vld [vmem:[#allocation8] sm:$0xff]
        %v555 = vld [vmem:[#allocation8 + $0x8] sm:$0xff]
        %v556 = vld [vmem:[#allocation8 + $0x10] sm:$0xff]
        %v557 = vld [vmem:[#allocation8 + $0x18] sm:$0xff]
        %v558 = vld [vmem:[#allocation8 + $0x20] sm:$0xff]
        %v559 = vld [vmem:[#allocation8 + $0x28] sm:$0xff]
        %v560 = vld [vmem:[#allocation8 + $0x30] sm:$0xff]
        %v561 = vld [vmem:[#allocation8 + $0x38] sm:$0xff]
        %v562 = vld [vmem:[#allocation8 + $0x40] sm:$0xff]
        %v563 = vld [vmem:[#allocation8 + $0x48] sm:$0xff]
        %v564 = vld [vmem:[#allocation8 + $0x50] sm:$0xff]
        %v565 = vld [vmem:[#allocation8 + $0x58] sm:$0xff]
        %v566 = vld [vmem:[#allocation8 + $0x60] sm:$0xff]
        %v567 = vld [vmem:[#allocation8 + $0x68] sm:$0xff]
        %v568 = vld [vmem:[#allocation8 + $0x70] sm:$0xff]
        %v569 = vld [vmem:[#allocation8 + $0x78] sm:$0xff]
        %v572 = vcombine.low %v552, %v553
        %v574 = vunpack.c.l.s4 1966171168
        %v575 = vunpack.c.0.s8 %v574
        %v576 = vlaneseq
        %v577 = vshrl.u32 %v576, 7
        %v578 = vsub.s32 %v575, %v577
        %v579 = vrot.slane %v572, %v578
        %v581 = vunpack.c.l.s4 1966171168
        %v582 = vunpack.c.0.s8 %v581
        %v583 = vlaneseq
        %v584 = vshrl.u32 %v583, 7
        %v585 = vsub.s32 %v582, %v584
        %v586 = vrot.slane %v579, %v585
        %v604 = vunpack.c.l.b16 %v554
        %v605 = vunpack.c.h.b16 %v554
        %v606 = vunpack.c.l.b16 %v555
        %v607 = vunpack.c.h.b16 %v555
        %v608 = vunpack.c.l.b16 %v556
        %v609 = vunpack.c.h.b16 %v556
        %v610 = vunpack.c.l.b16 %v557
        %v611 = vunpack.c.h.b16 %v557
        %v612 = vunpack.c.l.b16 %v558
        %v613 = vunpack.c.h.b16 %v558
        %v614 = vunpack.c.l.b16 %v559
        %v615 = vunpack.c.h.b16 %v559
        %v616 = vunpack.c.l.b16 %v560
        %v617 = vunpack.c.h.b16 %v560
        %v618 = vunpack.c.l.b16 %v561
        %v619 = vunpack.c.h.b16 %v561
        %v620 = vunpack.c.l.b16 %v562
        %v621 = vunpack.c.h.b16 %v562
        %v622 = vunpack.c.l.b16 %v563
        %v623 = vunpack.c.h.b16 %v563
        %v624 = vunpack.c.l.b16 %v564
        %v625 = vunpack.c.h.b16 %v564
        %v626 = vunpack.c.l.b16 %v565
        %v627 = vunpack.c.h.b16 %v565
        %v628 = vunpack.c.l.b16 %v566
        %v629 = vunpack.c.h.b16 %v566
        %v630 = vunpack.c.l.b16 %v567
        %v631 = vunpack.c.h.b16 %v567
        %v632 = vunpack.c.l.b16 %v568
        %v633 = vunpack.c.h.b16 %v568
        %v634 = vunpack.c.l.b16 %v569
        %v635 = vunpack.c.h.b16 %v569
        %v636 = vpack.c.b16 %v606, %v604
        %v637 = vpack.c.b16 %v607, %v605
        %v638 = vpack.c.b16 %v610, %v608
        %v639 = vpack.c.b16 %v611, %v609
        %v640 = vpack.c.b16 %v614, %v612
        %v641 = vpack.c.b16 %v615, %v613
        %v642 = vpack.c.b16 %v618, %v616
        %v643 = vpack.c.b16 %v619, %v617
        %v644 = vpack.c.b16 %v622, %v620
        %v645 = vpack.c.b16 %v623, %v621
        %v646 = vpack.c.b16 %v626, %v624
        %v647 = vpack.c.b16 %v627, %v625
        %v648 = vpack.c.b16 %v630, %v628
        %v649 = vpack.c.b16 %v631, %v629
        %v650 = vpack.c.b16 %v634, %v632
        %v651 = vpack.c.b16 %v635, %v633
        %668 = vmatprep.subr.bf16.mxu0 %v637
        %669 = vmatpush1.bf16.msra.mxu0 %v636
        %670 = vmatprep.subr.bf16.mxu0 %v639
        %671 = vmatpush1.bf16.msra.mxu0 %v638
        %672 = vmatprep.subr.bf16.mxu0 %v641
        %673 = vmatpush1.bf16.msra.mxu0 %v640
        %674 = vmatprep.subr.bf16.mxu0 %v643
        %675 = vmatpush1.bf16.msra.mxu0 %v642
        %676 = vmatprep.subr.bf16.mxu0 %v645
        %677 = vmatpush1.bf16.msra.mxu0 %v644
        %678 = vmatprep.subr.bf16.mxu0 %v647
        %679 = vmatpush1.bf16.msra.mxu0 %v646
        %680 = vmatprep.subr.bf16.mxu0 %v649
        %681 = vmatpush1.bf16.msra.mxu0 %v648
        %682 = vmatprep.subr.bf16.mxu0 %v651
        %683 = vmatpush1.bf16.msra.mxu0 %v650
        %684 = vmatprep.subr.bf16.mxu0 0
        %685 = vmatpush1.bf16.msra.mxu0 0
        %686 = vmatprep.subr.bf16.mxu0 0
        %687 = vmatpush1.bf16.msra.mxu0 0
        %688 = vmatprep.subr.bf16.mxu0 0
        %689 = vmatpush1.bf16.msra.mxu0 0
        %690 = vmatprep.subr.bf16.mxu0 0
        %691 = vmatpush1.bf16.msra.mxu0 0
        %692 = vmatprep.subr.bf16.mxu0 0
        %693 = vmatpush1.bf16.msra.mxu0 0
        %694 = vmatprep.subr.bf16.mxu0 0
        %695 = vmatpush1.bf16.msra.mxu0 0
        %696 = vmatprep.subr.bf16.mxu0 0
        %697 = vmatpush1.bf16.msra.mxu0 0
        %698 = vmatprep.subr.bf16.mxu0 0
        %699 = vmatpush1.bf16.msra.mxu0 0
        %700 = vmatprep.mubr.bf16.mxu0 0
        %701 = vmatmul.mubr.bf16.gmra.mrb[0].mxu0 %v586
        %v702 = vpop.f32.mrb[0].mxu0
        %v703 = vadd.f32 0.0, %v702
        %v704 = vpop.f32.mrb[0].mxu0
        %v705 = vadd.f32 0.0, %v704
        %v706 = vpop.f32.mrb[0].mxu0
        %v707 = vpop.f32.mrb[0].mxu0
        %708 = vdwg.mxu0
        %v709 = vld [vmem:[%s5] ss:$2 sm:$0x3]
        %v711 = vlaneseq
        %v712 = vshrl.u32 %v711, 7
        %v713 = vsub.s32 0, %v712
        %v714 = vrot.slane %v709, %v713
        %v715 = vlaneseq
        %v716 = vshrl.u32 %v715, 7
        %v717 = vsub.s32 1, %v716
        %v718 = vrot.slane %v709, %v717
        %v721 = vmul.f32 %v703, %v714
        %v722 = vmul.f32 %v705, %v718
        %s723 = scalar_lea.vmem %s5, 1
        %v724 = vld [vmem:[%s723] ss:$2 sm:$0x3]
        %v726 = vlaneseq
        %v727 = vshrl.u32 %v726, 7
        %v728 = vsub.s32 0, %v727
        %v729 = vrot.slane %v724, %v728
        %v730 = vlaneseq
        %v731 = vshrl.u32 %v730, 7
        %v732 = vsub.s32 1, %v731
        %v733 = vrot.slane %v724, %v732
        %v736 = vadd.f32 %v721, %v729
        %v737 = vadd.f32 %v722, %v733
        %v738 = vxor.u32 %v736, 2147483648
        %v739 = vmul.f32 %v738, 1.442695
        %v740 = vpow.pop %v739
        %v741 = vadd.f32 %v740, 1.0
        %v742 = vrcp.pop %v741
        %v743 = vmul.f32 1.0, %v742
        %v744 = vmul.f32 %v743, %v550
        %v745 = vadd.f32 %v744, %v737
        %v748 = vunpack.c.l.s4 1983009808
        %v749 = vunpack.c.0.s8 %v748
        %v750 = vlaneseq
        %v751 = vshrl.u32 %v750, 7
        %v752 = vsub.s32 %v749, %v751
        %v753 = vrot.slane %v745, %v752
        %v754 = vcombine.high %v753, %v753
        %v757 = vpack.c.bf16 %v753, %v753
        %v758 = vpack.c.bf16 %v754, %v754
        %759 = vst [vmem:[%s361] sm:$0x1] %v757
        %760 = vst [vmem:[%s361 + $0x2] sm:$0x1] %v758
        %s761 = scalar_lea.vmem %s320, 1 [#allocation5]
        %v762 = vld [vmem:[%s761] sm:$0x1]
        %v763 = vld [vmem:[%s761 + $0x2] sm:$0x1]
        %v764 = vld [vmem:[#allocation8] sm:$0xff]
        %v765 = vld [vmem:[#allocation8 + $0x8] sm:$0xff]
        %v766 = vld [vmem:[#allocation8 + $0x10] sm:$0xff]
        %v767 = vld [vmem:[#allocation8 + $0x18] sm:$0xff]
        %v768 = vld [vmem:[#allocation8 + $0x20] sm:$0xff]
        %v769 = vld [vmem:[#allocation8 + $0x28] sm:$0xff]
        %v770 = vld [vmem:[#allocation8 + $0x30] sm:$0xff]
        %v771 = vld [vmem:[#allocation8 + $0x38] sm:$0xff]
        %v772 = vld [vmem:[#allocation8 + $0x40] sm:$0xff]
        %v773 = vld [vmem:[#allocation8 + $0x48] sm:$0xff]
        %v774 = vld [vmem:[#allocation8 + $0x50] sm:$0xff]
        %v775 = vld [vmem:[#allocation8 + $0x58] sm:$0xff]
        %v776 = vld [vmem:[#allocation8 + $0x60] sm:$0xff]
        %v777 = vld [vmem:[#allocation8 + $0x68] sm:$0xff]
        %v778 = vld [vmem:[#allocation8 + $0x70] sm:$0xff]
        %v779 = vld [vmem:[#allocation8 + $0x78] sm:$0xff]
        %v782 = vcombine.low %v762, %v763
        %v784 = vunpack.c.l.s4 1966171168
        %v785 = vunpack.c.0.s8 %v784
        %v786 = vlaneseq
        %v787 = vshrl.u32 %v786, 7
        %v788 = vsub.s32 %v785, %v787
        %v789 = vrot.slane %v782, %v788
        %v791 = vunpack.c.l.s4 1966171168
        %v792 = vunpack.c.0.s8 %v791
        %v793 = vlaneseq
        %v794 = vshrl.u32 %v793, 7
        %v795 = vsub.s32 %v792, %v794
        %v796 = vrot.slane %v789, %v795
        %v814 = vunpack.c.l.b16 %v764
        %v815 = vunpack.c.h.b16 %v764
        %v816 = vunpack.c.l.b16 %v765
        %v817 = vunpack.c.h.b16 %v765
        %v818 = vunpack.c.l.b16 %v766
        %v819 = vunpack.c.h.b16 %v766
        %v820 = vunpack.c.l.b16 %v767
        %v821 = vunpack.c.h.b16 %v767
        %v822 = vunpack.c.l.b16 %v768
        %v823 = vunpack.c.h.b16 %v768
        %v824 = vunpack.c.l.b16 %v769
        %v825 = vunpack.c.h.b16 %v769
        %v826 = vunpack.c.l.b16 %v770
        %v827 = vunpack.c.h.b16 %v770
        %v828 = vunpack.c.l.b16 %v771
        %v829 = vunpack.c.h.b16 %v771
        %v830 = vunpack.c.l.b16 %v772
        %v831 = vunpack.c.h.b16 %v772
        %v832 = vunpack.c.l.b16 %v773
        %v833 = vunpack.c.h.b16 %v773
        %v834 = vunpack.c.l.b16 %v774
        %v835 = vunpack.c.h.b16 %v774
        %v836 = vunpack.c.l.b16 %v775
        %v837 = vunpack.c.h.b16 %v775
        %v838 = vunpack.c.l.b16 %v776
        %v839 = vunpack.c.h.b16 %v776
        %v840 = vunpack.c.l.b16 %v777
        %v841 = vunpack.c.h.b16 %v777
        %v842 = vunpack.c.l.b16 %v778
        %v843 = vunpack.c.h.b16 %v778
        %v844 = vunpack.c.l.b16 %v779
        %v845 = vunpack.c.h.b16 %v779
        %v846 = vpack.c.b16 %v816, %v814
        %v847 = vpack.c.b16 %v817, %v815
        %v848 = vpack.c.b16 %v820, %v818
        %v849 = vpack.c.b16 %v821, %v819
        %v850 = vpack.c.b16 %v824, %v822
        %v851 = vpack.c.b16 %v825, %v823
        %v852 = vpack.c.b16 %v828, %v826
        %v853 = vpack.c.b16 %v829, %v827
        %v854 = vpack.c.b16 %v832, %v830
        %v855 = vpack.c.b16 %v833, %v831
        %v856 = vpack.c.b16 %v836, %v834
        %v857 = vpack.c.b16 %v837, %v835
        %v858 = vpack.c.b16 %v840, %v838
        %v859 = vpack.c.b16 %v841, %v839
        %v860 = vpack.c.b16 %v844, %v842
        %v861 = vpack.c.b16 %v845, %v843
        %878 = vmatprep.subr.bf16.mxu0 %v847
        %879 = vmatpush1.bf16.msra.mxu0 %v846
        %880 = vmatprep.subr.bf16.mxu0 %v849
        %881 = vmatpush1.bf16.msra.mxu0 %v848
        %882 = vmatprep.subr.bf16.mxu0 %v851
        %883 = vmatpush1.bf16.msra.mxu0 %v850
        %884 = vmatprep.subr.bf16.mxu0 %v853
        %885 = vmatpush1.bf16.msra.mxu0 %v852
        %886 = vmatprep.subr.bf16.mxu0 %v855
        %887 = vmatpush1.bf16.msra.mxu0 %v854
        %888 = vmatprep.subr.bf16.mxu0 %v857
        %889 = vmatpush1.bf16.msra.mxu0 %v856
        %890 = vmatprep.subr.bf16.mxu0 %v859
        %891 = vmatpush1.bf16.msra.mxu0 %v858
        %892 = vmatprep.subr.bf16.mxu0 %v861
        %893 = vmatpush1.bf16.msra.mxu0 %v860
        %894 = vmatprep.subr.bf16.mxu0 0
        %895 = vmatpush1.bf16.msra.mxu0 0
        %896 = vmatprep.subr.bf16.mxu0 0
        %897 = vmatpush1.bf16.msra.mxu0 0
        %898 = vmatprep.subr.bf16.mxu0 0
        %899 = vmatpush1.bf16.msra.mxu0 0
        %900 = vmatprep.subr.bf16.mxu0 0
        %901 = vmatpush1.bf16.msra.mxu0 0
        %902 = vmatprep.subr.bf16.mxu0 0
        %903 = vmatpush1.bf16.msra.mxu0 0
        %904 = vmatprep.subr.bf16.mxu0 0
        %905 = vmatpush1.bf16.msra.mxu0 0
        %906 = vmatprep.subr.bf16.mxu0 0
        %907 = vmatpush1.bf16.msra.mxu0 0
        %908 = vmatprep.subr.bf16.mxu0 0
        %909 = vmatpush1.bf16.msra.mxu0 0
        %910 = vmatprep.mubr.bf16.mxu0 0
        %911 = vmatmul.mubr.bf16.gmra.mrb[0].mxu0 %v796
        %v912 = vpop.f32.mrb[0].mxu0
        %v913 = vadd.f32 0.0, %v912
        %v914 = vpop.f32.mrb[0].mxu0
        %v915 = vadd.f32 0.0, %v914
        %v916 = vpop.f32.mrb[0].mxu0
        %v917 = vpop.f32.mrb[0].mxu0
        %918 = vdwg.mxu0
        %v919 = vld [vmem:[%s5] ss:$2 sm:$0x3]
        %v921 = vlaneseq
        %v922 = vshrl.u32 %v921, 7
        %v923 = vsub.s32 0, %v922
        %v924 = vrot.slane %v919, %v923
        %v925 = vlaneseq
        %v926 = vshrl.u32 %v925, 7
        %v927 = vsub.s32 1, %v926
        %v928 = vrot.slane %v919, %v927
        %v931 = vmul.f32 %v913, %v924
        %v932 = vmul.f32 %v915, %v928
        %v933 = vld [vmem:[%s723] ss:$2 sm:$0x3]
        %v935 = vlaneseq
        %v936 = vshrl.u32 %v935, 7
        %v937 = vsub.s32 0, %v936
        %v938 = vrot.slane %v933, %v937
        %v939 = vlaneseq
        %v940 = vshrl.u32 %v939, 7
        %v941 = vsub.s32 1, %v940
        %v942 = vrot.slane %v933, %v941
        %v945 = vadd.f32 %v931, %v938
        %v946 = vadd.f32 %v932, %v942
        %v947 = vxor.u32 %v945, 2147483648
        %v948 = vmul.f32 %v947, 1.442695
        %v949 = vpow.pop %v948
        %v950 = vadd.f32 %v949, 1.0
        %v951 = vrcp.pop %v950
        %v952 = vmul.f32 1.0, %v951
        %v953 = vmul.f32 %v952, %v551
        %v954 = vadd.f32 %v953, %v946
        %v957 = vunpack.c.l.s4 1983009808
        %v958 = vunpack.c.0.s8 %v957
        %v959 = vlaneseq
        %v960 = vshrl.u32 %v959, 7
        %v961 = vsub.s32 %v958, %v960
        %v962 = vrot.slane %v954, %v961
        %v963 = vcombine.high %v962, %v962
        %v966 = vpack.c.bf16 %v962, %v962
        %v967 = vpack.c.bf16 %v963, %v963
        %s968 = scalar_lea.vmem %s361, 1 [#allocation10]
        %969 = vst [vmem:[%s968] sm:$0x1] %v966
        %970 = vst [vmem:[%s968 + $0x2] sm:$0x1] %v967
        %s971 = sand.u32 %s189, 1
        %s972 = scalar_lea.sflag [#allocation4], %s971
        %s973 = sand.u32 %s189, 1
        %s974 = smul.addr %s973, 4
        %s975 = scalar_lea.vmem [#allocation10], %s974
        // Predicated region
        $region61: #{tpu_custom_call.1} parent=43 // pred_check
          %p976 = pneg %p199
        $region62: #{tpu_custom_call.1} parent=43 // pred_check_branch
          %978 = sbr.rel (%p976) target = $region64
        $region63: #{tpu_custom_call.1} parent=43 // pred_region
          %s979 = smul.u32 2, %s32
          %s981 = ssub.s32 64, 64
          %982 = vsyncadd %s972, %s981
          %s983 = smul.addr %s979, 2
          %s984 = smul.addr %s31, 4
          %s985 = sadd.s32 %s983, %s984
          %s986 = smul.addr %s985, 16
          %s987 = scalar_lea.hbm %s6, %s986
          %s988 = sshll.u32 %s975, 4
          %s989 = int_to_ptr.vmem [resolvable:$true] %s988
          %994 = dma.vmem_to_hbm [thread:$0]  %s989, 64, %s987, %s972, 16, 16, 1
        $region64: #{tpu_custom_call.1} parent=43 // pred_fallthru
          _
      $region44: #{tpu_custom_call.1} parent=5 // pred_fallthru
        _
      %p995 = scmp.le.s32.totalorder 2, %s22
      // Predicated region
      $region65: #{tpu_custom_call.1} parent=5 // pred_check
        %p996 = pneg %p995
      $region66: #{tpu_custom_call.1} parent=5 // pred_check_branch
        %998 = sbr.rel (%p996) target = $region68
      $region67: #{tpu_custom_call.1} parent=5 // pred_region
        %s999 = ssub.s32 %s22, 2
        // Predicated region
        $region69: #{tpu_custom_call.1} parent=67 // pred_check
          %p1000 = pneg %p205
        $region70: #{tpu_custom_call.1} parent=67 // pred_check_branch
          %1002 = sbr.rel (%p1000) target = $region72
        $region71: #{tpu_custom_call.1} parent=67 // pred_region
          %s1003 = sand.u32 %s190, 1
          %s1004 = scalar_lea.sflag [#allocation4], %s1003
          %s1005 = sand.u32 %s190, 1
          %s1006 = smul.addr %s1005, 4
          %s1007 = scalar_lea.vmem [#allocation10], %s1006
          %1008 = dma.done %s1004, 64
        $region72: #{tpu_custom_call.1} parent=67 // pred_fallthru
          _
      $region68: #{tpu_custom_call.1} parent=5 // pred_fallthru
        _
    $region6: #{tpu_custom_call.1} parent=1 // loop_footer
      %s26 = sadd.s32 1, %s22
    $region7: #{tpu_custom_call.1} parent=1 // loop_footer_branch
      %21 = sbr.rel target = $region3
    $region8: #{tpu_custom_call.1} parent=1 // loop_exit
      _
    %1009 = vsyncpa [#allocation3], 1
    %s1010 = scalar_lea.sflag [#allocation3], 1
    %1011 = vsyncpa %s1010, 1
    %1012 = vsyncpa [#allocation6], 1
    %s1013 = scalar_lea.sflag [#allocation6], 1
    %1014 = vsyncpa %s1013, 1
    %1015 = vsyncpa [#allocation9], 1
    %1016 = vsyncpa [#allocation4], 1
    %s1017 = scalar_lea.sflag [#allocation4], 1
    %1018 = vsyncpa %s1017, 1

</llo_original>
